<compile_context>
chip_gen: v7x
topology: tpu7x:2x2x1
jax: 0.10.0
libtpu: 0.0.40
codegen_flags: <defaults>
</compile_context>

<pallas_src>
import functools

import jax
import jax.numpy as jnp
from jax.experimental import pallas as pl
from jax.experimental.pallas import tpu as pltpu


def _scale_kernel(x_ref, o_ref, *, const):
    # Pure elementwise multiply on the whole VMEM tile (VPU work, splat constant).
    o_ref[...] = x_ref[...] * jnp.asarray(const, dtype=x_ref.dtype)


def _sublane_multiple(dtype):
    itemsize = jnp.dtype(dtype).itemsize
    if itemsize >= 4:
        return 8
    if itemsize == 2:
        return 16
    return 32


def _round_up(x, m):
    return ((x + m - 1) // m) * m


def scaling_forward(x, const, *, lane_cols=1024,
                    target_tile_bytes=4 * 1024 * 1024,
                    donate_input=False):
    """Computes x * const with a Pallas TPU kernel (any input shape)."""
    orig_shape = x.shape
    dtype = x.dtype
    total = x.size
    itemsize = jnp.dtype(dtype).itemsize
    sub = _sublane_multiple(dtype)

    # Lane-dense column count: large multiple of 128 so stores are full vst.
    cols = lane_cols
    assert cols % 128 == 0

    # Rows of `cols` lanes needed to hold every element.
    rows_needed = pl.cdiv(total, cols)

    # Block rows from a byte budget, kept to the sublane packing multiple.
    row_bytes = cols * itemsize
    block_rows = max(sub, (target_tile_bytes // row_bytes) // sub * sub)
    # Don't make the block bigger than the data needs.
    block_rows = min(block_rows, _round_up(rows_needed, sub))

    grid_rows = pl.cdiv(rows_needed, block_rows)
    # v7x megacore: keep >=2 parallel grid steps when there's enough data to split.
    if grid_rows == 1 and rows_needed >= 2 * sub:
        block_rows = _round_up(pl.cdiv(rows_needed, 2), sub)
        grid_rows = pl.cdiv(rows_needed, block_rows)

    rows = grid_rows * block_rows          # padded row count, divides evenly
    padded_total = rows * cols

    flat = x.reshape(total)
    if padded_total != total:
        flat = jnp.pad(flat, (0, padded_total - total))
    x2d = flat.reshape(rows, cols)

    cost = pl.CostEstimate(
        flops=total,
        transcendentals=0,
        bytes_accessed=2 * total * itemsize,
    )

    call_kwargs = dict(
        out_shape=jax.ShapeDtypeStruct((rows, cols), dtype),
        grid=(grid_rows,),
        in_specs=[pl.BlockSpec((block_rows, cols), lambda i: (i, 0))],
        out_specs=pl.BlockSpec((block_rows, cols), lambda i: (i, 0)),
        compiler_params=pltpu.CompilerParams(
            dimension_semantics=("parallel",),
            # 4 MiB tile x (2 in-bufs + 2 out-bufs) = 16 MiB + headroom;
            # fits all generations (v5e scoped default is only 16 MiB).
            vmem_limit_bytes=32 * 1024 * 1024,
        ),
        cost_estimate=cost,
    )
    if donate_input:
        # Optional: alias output onto the (temporary, padded) input slab.
        call_kwargs["input_output_aliases"] = {0: 0}

    out2d = pl.pallas_call(
        functools.partial(_scale_kernel, const=const), **call_kwargs
    )(x2d)

    out_flat = out2d.reshape(padded_total)
    if padded_total != total:
        out_flat = out_flat[:total]
    return out_flat.reshape(orig_shape)


if __name__ == "__main__":
    key = jax.random.PRNGKey(0)
    # Small NCHW input consistent with the module's forward.
    x = jax.random.normal(key, (2, 4, 16, 16), dtype=jnp.float32)
    const = 2.5  # deterministic module "parameter" (scaling.__init__(const))

    out = scaling_forward(x, const)
    out = jax.block_until_ready(out)

    # Correctness check against the trivial reference.
    ref = x * const
    assert out.shape == x.shape
    assert jnp.allclose(out, ref, atol=1e-6), "mismatch vs reference"
    print("KERNEL_OK")
</pallas_src>

<mosaic_0001>
module attributes {stable_mosaic.version = 11 : i64} {
  func.func @_scale_kernel(%arg0: i32, %arg1: memref<8x1024xf32, #tpu.memory_space<vmem>>, %arg2: memref<8x1024xf32, #tpu.memory_space<vmem>>) attributes {dimension_semantics = [#tpu.dimension_semantics<parallel>], iteration_bounds = array<i64: 1>, scalar_prefetch = 0 : i64, scratch_operands = 0 : i64, tpu.core_type = #tpu.core_type<tc>, window_params = [{transform_indices = @transform_0, window_bounds = array<i64: 8, 1024>}, {transform_indices = @transform_1, window_bounds = array<i64: 8, 1024>}]} {
    %c0 = arith.constant 0 : index
    %c0_0 = arith.constant 0 : index
    %0 = vector.load %arg1[%c0, %c0_0] : memref<8x1024xf32, #tpu.memory_space<vmem>>, vector<8x1024xf32>
    %cst = arith.constant 2.500000e+00 : f32
    %1 = vector.broadcast %cst : f32 to vector<8x1024xf32>
    %2 = arith.mulf %0, %1 : vector<8x1024xf32>
    %c0_1 = arith.constant 0 : index
    %c0_2 = arith.constant 0 : index
    %3 = vector.load %arg2[%c0_1, %c0_2] : memref<8x1024xf32, #tpu.memory_space<vmem>>, vector<8x1024xf32>
    tpu.vector_store %arg2[%c0_1, %c0_2], %2 {strides = array<i32>} : memref<8x1024xf32, #tpu.memory_space<vmem>>, vector<8x1024xf32>,
    return
  }
  func.func @transform_0(%arg0: i32) -> (i32, i32) {
    %c0_i32 = arith.constant 0 : i32
    %c0_i32_0 = arith.constant 0 : i32
    return %arg0, %c0_i32 : i32, i32
  }
  func.func @transform_1(%arg0: i32) -> (i32, i32) {
    %c0_i32 = arith.constant 0 : i32
    %c0_i32_0 = arith.constant 0 : i32
    return %arg0, %c0_i32 : i32, i32
  }
}

</mosaic_0001>

<llo_original>
// kernel: tpu_custom_call.1
$region0: #{tpu_custom_call.1}
  #allocation0 [shape = 'u32[]', space=smem, size = 0x4, offset = 0x4, fixed_abs, tag = 'smem constant byte address 0x4 - core index']
  #allocation1 [shape = 'u32[144,128]{1,0:T(1,128)}', space=vmem, size = 0x12000, scoped, tag = 'internal scratch']
  %s0 = inlined_call_operand.hbm [shape: f32[8,1024], index: 0, kind: input, shape index: {}]
  %s1 = inlined_call_operand.hbm [shape: f32[8,1024], index: 1, kind: output, shape index: {}]
  %s2 = sld [smem:[#allocation0]]
  $region18: #{tpu_custom_call.1} parent=0
    _
  %s4 = ssub.s32 1, %s2
  %s5 = scalar_select 0, %s4, %s2
  $region1: #{tpu_custom_call.1} parent=0
    #allocation2 [shape = 'u8[32768]{0}', space=vmem, size = 0x8000, scoped, tag = 'input window, operand 0, single buffered']
    #allocation3 [shape = 's32[1]{0}', space=sflag, size = 0x4, scoped, tag = 'scoped memory for tpu_custom_call.1']
    #allocation4 [shape = 's32[1]{0}', space=sflag, size = 0x4, scoped, tag = 'scoped memory for tpu_custom_call.1']
    #allocation5 [shape = 'u8[32768]{0}', space=vmem, size = 0x8000, scoped, tag = 'output window, operand 0, single buffered']
    %6 = vsyncpa [#allocation3], 0
    %7 = vsyncpa [#allocation4], 0
    // Predicated region
    $region2: #{tpu_custom_call.1} parent=1 // pred_check
      _
    $region3: #{tpu_custom_call.1} parent=1 // pred_check_branch
      %9 = sbr.rel (0) target = $region5
    $region4: #{tpu_custom_call.1} parent=1 // pred_region
      %s11 = ssub.s32 1024, 1024
      %12 = vsyncadd [#allocation3], %s11
      %s14 = sshll.u32 [#allocation2], 4
      %s15 = int_to_ptr.vmem [resolvable:$true] %s14
      %17 = dma.hbm_to_vmem [thread:$0]  %s0, 1024, %s15, [#allocation3]
    $region5: #{tpu_custom_call.1} parent=1 // pred_fallthru
      _
    // Predicated region
    $region6: #{tpu_custom_call.1} parent=1 // pred_check
      _
    $region7: #{tpu_custom_call.1} parent=1 // pred_check_branch
      %19 = sbr.rel (0) target = $region9
    $region8: #{tpu_custom_call.1} parent=1 // pred_region
      %20 = dma.done [#allocation3], 1024
    $region9: #{tpu_custom_call.1} parent=1 // pred_fallthru
      _
    %v21 = vld [vmem:[#allocation2] sm:$0xff]
    %v22 = vld [vmem:[#allocation2 + $0x8] sm:$0xff]
    %v23 = vld [vmem:[#allocation2 + $0x10] sm:$0xff]
    %v24 = vld [vmem:[#allocation2 + $0x18] sm:$0xff]
    %v25 = vld [vmem:[#allocation2 + $0x20] sm:$0xff]
    %v26 = vld [vmem:[#allocation2 + $0x28] sm:$0xff]
    %v27 = vld [vmem:[#allocation2 + $0x30] sm:$0xff]
    %v28 = vld [vmem:[#allocation2 + $0x38] sm:$0xff]
    %v29 = vmul.f32 %v21, 2.5
    %v30 = vmul.f32 %v22, 2.5
    %v31 = vmul.f32 %v23, 2.5
    %v32 = vmul.f32 %v24, 2.5
    %v33 = vmul.f32 %v25, 2.5
    %v34 = vmul.f32 %v26, 2.5
    %v35 = vmul.f32 %v27, 2.5
    %v36 = vmul.f32 %v28, 2.5
    %37 = vst [vmem:[#allocation5] sm:$0xff] %v29
    %38 = vst [vmem:[#allocation5 + $0x8] sm:$0xff] %v30
    %39 = vst [vmem:[#allocation5 + $0x10] sm:$0xff] %v31
    %40 = vst [vmem:[#allocation5 + $0x18] sm:$0xff] %v32
    %41 = vst [vmem:[#allocation5 + $0x20] sm:$0xff] %v33
    %42 = vst [vmem:[#allocation5 + $0x28] sm:$0xff] %v34
    %43 = vst [vmem:[#allocation5 + $0x30] sm:$0xff] %v35
    %44 = vst [vmem:[#allocation5 + $0x38] sm:$0xff] %v36
    // Predicated region
    $region10: #{tpu_custom_call.1} parent=1 // pred_check
      _
    $region11: #{tpu_custom_call.1} parent=1 // pred_check_branch
      %46 = sbr.rel (0) target = $region13
    $region12: #{tpu_custom_call.1} parent=1 // pred_region
      %s48 = ssub.s32 1024, 1024
      %49 = vsyncadd [#allocation4], %s48
      %s51 = sshll.u32 [#allocation5], 4
      %s52 = int_to_ptr.vmem [resolvable:$true] %s51
      %54 = dma.vmem_to_hbm [thread:$0]  %s52, 1024, %s1, [#allocation4]
    $region13: #{tpu_custom_call.1} parent=1 // pred_fallthru
      _
    // Predicated region
    $region14: #{tpu_custom_call.1} parent=1 // pred_check
      _
    $region15: #{tpu_custom_call.1} parent=1 // pred_check_branch
      %56 = sbr.rel (0) target = $region17
    $region16: #{tpu_custom_call.1} parent=1 // pred_region
      %57 = dma.done [#allocation4], 1024
    $region17: #{tpu_custom_call.1} parent=1 // pred_fallthru
      _
    %58 = vsyncpa [#allocation3], 1
    %59 = vsyncpa [#allocation4], 1

</llo_original>
